<compile_context>
chip_gen: v6e
topology: v6e:2x2x1
jax: 0.10.0
libtpu: 0.0.40
codegen_flags: <defaults>
</compile_context>

<pallas_src>
import math

import jax
import jax.numpy as jnp
from jax.experimental import pallas as pl
from jax.experimental.pallas import tpu as pltpu


def _pe_add_kernel(x_ref, pe_ref, o_ref):
    # Elementwise add; the (1, N) positional encoding broadcasts across the
    # batch (sublane) dimension, matching PyTorch `x + self.positional_encoding`.
    o_ref[...] = x_ref[...] + pe_ref[...]


def _round_down(x, m):
    return (x // m) * m


def _round_up(x, m):
    return ((x + m - 1) // m) * m


def learnable_positional_encoding(
    x, pos_enc, *, tile_rows=4096, force_pallas=False, donate_x=False
):
    """x: (B, num_bands), pos_enc: (1, num_bands) -> (B, num_bands)."""
    B, N = x.shape
    assert pos_enc.shape == (1, N)
    itemsize = jnp.dtype(x.dtype).itemsize

    # --- Tiny-input fast path -------------------------------------------------
    # At e.g. (4, 400) f32 an XLA-fused add is strictly cheaper than any
    # standalone pallas_call (launch + DMA setup are pure overhead).
    if not force_pallas and B * N * itemsize <= 256 * 1024:
        return x + pos_enc

    # --- Generation-aware VMEM budget ------------------------------------------
    # v7x has 64 MiB VMEM per TC, v5e/v6e have 128 MiB; keep the double-buffered
    # working set comfortably inside ~3/4 of physical VMEM.
    try:
        vmem_cap = int(pltpu.get_tpu_info().vmem_capacity_bytes)
    except Exception:
        vmem_cap = 64 * 1024 * 1024  # conservative fallback (v7x-sized)
    budget = (3 * vmem_cap) // 4

    row_bytes = N * itemsize
    # Resident PE: (1, N) padded to (8, round_up(N, 128)) per buffer, double-buffered.
    pe_bytes = 2 * 8 * _round_up(N, 128) * itemsize
    headroom = 2 * 1024 * 1024

    # 2 double-buffered input tiles + 2 double-buffered output tiles = 4 tiles.
    max_tb = (budget - pe_bytes - headroom) // (4 * row_bytes)
    max_tb = max(_round_down(max_tb, 8), 8)

    tb = min(B, tile_rows, max_tb)

    # v7x: ensure >= 2 grid steps when the batch is big enough so the "parallel"
    # annotation lets both TensorCores stream their half of the batch.
    if B >= 16:
        tb = min(tb, _round_up(pl.cdiv(B, 2), 8))

    if tb >= B:
        tb = B  # block equals full array dim -> always legal
    else:
        tb = max(_round_down(tb, 8), 8)  # (8, 128) tiling rule on the sublane dim

    grid = (pl.cdiv(B, tb),)

    footprint = 4 * tb * row_bytes + pe_bytes + headroom
    vmem_limit = int(min(max(footprint, 8 * 1024 * 1024), vmem_cap))

    cost = pl.CostEstimate(
        flops=B * N,
        transcendentals=0,
        bytes_accessed=(2 * B * N + N) * itemsize,
    )

    extra = {}
    if donate_x:
        # In-place add: saves the HBM output allocation when x can be donated.
        extra["input_output_aliases"] = {0: 0}

    return pl.pallas_call(
        _pe_add_kernel,
        out_shape=jax.ShapeDtypeStruct((B, N), x.dtype),
        grid=grid,
        in_specs=[
            pl.BlockSpec((tb, N), lambda i: (i, 0)),
            pl.BlockSpec((1, N), lambda i: (0, 0)),  # PE stays VMEM-resident
        ],
        out_specs=pl.BlockSpec((tb, N), lambda i: (i, 0)),
        compiler_params=pltpu.CompilerParams(
            dimension_semantics=("parallel",),  # shards batch axis over v7x's 2 TCs
            vmem_limit_bytes=vmem_limit,
        ),
        cost_estimate=cost,
        **extra,
    )(x, pos_enc)


def init_positional_encoding(key, num_bands, dtype=jnp.float32):
    # Matches nn.init.xavier_uniform_ on a (1, num_bands) parameter:
    # fan_in = num_bands, fan_out = 1, bound = sqrt(6 / (fan_in + fan_out)).
    bound = math.sqrt(6.0 / (num_bands + 1))
    return jax.random.uniform(
        key, (1, num_bands), dtype=dtype, minval=-bound, maxval=bound
    )


if __name__ == "__main__":
    num_bands = 400   # matches the module's global `num_bands`
    latent_dim = 32   # unused by the module (as in the PyTorch __init__)

    key = jax.random.PRNGKey(0)
    k_x, k_pe, k_x2 = jax.random.split(key, 3)
    pos_enc = init_positional_encoding(k_pe, num_bands)

    # 1) Module-sized input (4, 400): goes through the fused-add fast path.
    x_small = jax.random.normal(k_x, (4, num_bands), dtype=jnp.float32)
    out_small = jax.block_until_ready(
        learnable_positional_encoding(x_small, pos_enc)
    )
    assert out_small.shape == (4, num_bands)
    assert jnp.allclose(out_small, x_small + pos_enc, atol=1e-6), "fast-path mismatch"

    # 2) Forced Pallas path on a slightly larger batch: exercises a 2-step grid
    #    (tb = 32, grid = (2,)) so the actual kernel + pipelining are covered.
    x_big = jax.random.normal(k_x2, (64, num_bands), dtype=jnp.float32)
    out_big = jax.block_until_ready(
        learnable_positional_encoding(x_big, pos_enc, force_pallas=True)
    )
    assert out_big.shape == (64, num_bands)
    assert jnp.allclose(out_big, x_big + pos_enc, atol=1e-6), "kernel mismatch vs reference"

    print("KERNEL_OK")
</pallas_src>

<mosaic_0001>
module attributes {stable_mosaic.version = 11 : i64} {
  func.func @_pe_add_kernel(%arg0: i32, %arg1: memref<32x400xf32, #tpu.memory_space<vmem>>, %arg2: memref<1x400xf32, #tpu.memory_space<vmem>>, %arg3: memref<32x400xf32, #tpu.memory_space<vmem>>) attributes {dimension_semantics = [#tpu.dimension_semantics<parallel>], iteration_bounds = array<i64: 2>, scalar_prefetch = 0 : i64, scratch_operands = 0 : i64, tpu.core_type = #tpu.core_type<tc>, window_params = [{transform_indices = @transform_0, window_bounds = array<i64: 32, 400>}, {pipeline_mode = #tpu.pipeline_mode<synchronous>, transform_indices = @transform_1, window_bounds = array<i64: 1, 400>}, {transform_indices = @transform_2, window_bounds = array<i64: 32, 400>}]} {
    %c0 = arith.constant 0 : index
    %c0_0 = arith.constant 0 : index
    %0 = vector.load %arg1[%c0, %c0_0] : memref<32x400xf32, #tpu.memory_space<vmem>>, vector<32x400xf32>
    %c0_1 = arith.constant 0 : index
    %c0_2 = arith.constant 0 : index
    %1 = vector.load %arg2[%c0_1, %c0_2] : memref<1x400xf32, #tpu.memory_space<vmem>>, vector<1x400xf32>
    %2 = vector.broadcast %1 : vector<1x400xf32> to vector<32x400xf32>
    %3 = arith.addf %0, %2 : vector<32x400xf32>
    %c0_3 = arith.constant 0 : index
    %c0_4 = arith.constant 0 : index
    %4 = vector.load %arg3[%c0_3, %c0_4] : memref<32x400xf32, #tpu.memory_space<vmem>>, vector<32x400xf32>
    tpu.vector_store %arg3[%c0_3, %c0_4], %3 {strides = array<i32>} : memref<32x400xf32, #tpu.memory_space<vmem>>, vector<32x400xf32>,
    return
  }
  func.func @transform_0(%arg0: i32) -> (i32, i32) {
    %c0_i32 = arith.constant 0 : i32
    %c0_i32_0 = arith.constant 0 : i32
    return %arg0, %c0_i32 : i32, i32
  }
  func.func @transform_1(%arg0: i32) -> (i32, i32) {
    %c0_i32 = arith.constant 0 : i32
    %c0_i32_0 = arith.constant 0 : i32
    %c0_i32_1 = arith.constant 0 : i32
    return %c0_i32, %c0_i32_0 : i32, i32
  }
  func.func @transform_2(%arg0: i32) -> (i32, i32) {
    %c0_i32 = arith.constant 0 : i32
    %c0_i32_0 = arith.constant 0 : i32
    return %arg0, %c0_i32 : i32, i32
  }
}

</mosaic_0001>

<llo_original>
// kernel: tpu_custom_call.1
$region0: #{tpu_custom_call.1}
  #allocation0 [shape = 'u32[]', space=smem, size = 0x4, offset = 0x4, fixed_abs, tag = 'smem constant byte address 0x4 - core index']
  #allocation1 [shape = 'u32[144,128]{1,0:T(1,128)}', space=vmem, size = 0x12000, scoped, tag = 'internal scratch']
  %s0 = inlined_call_operand.hbm [shape: f32[64,400], index: 0, kind: input, shape index: {}]
  %s1 = inlined_call_operand.hbm [shape: f32[1,400], index: 1, kind: input, shape index: {}]
  %s2 = inlined_call_operand.hbm [shape: f32[64,400], index: 2, kind: output, shape index: {}]
  %s3 = sld [smem:[#allocation0]]
  $region49: #{tpu_custom_call.1} parent=0
    _
  %s5 = ssub.s32 1, %s3
  %s6 = scalar_select 0, %s5, %s3
  $region1: #{tpu_custom_call.1} parent=0
    #allocation2 [shape = 'u8[131072]{0}', space=vmem, size = 0x20000, scoped, tag = 'input window, operand 0']
    #allocation3 [shape = 's32[2]{0}', space=sflag, size = 0x8, scoped, tag = 'scoped memory for tpu_custom_call.1']
    #allocation4 [shape = 's32[2]{0}', space=sflag, size = 0x8, scoped, tag = 'scoped memory for tpu_custom_call.1']
    #allocation5 [shape = 'u8[2048]{0}', space=vmem, size = 0x800, scoped, tag = 'input window, operand 1, single buffered']
    #allocation6 [shape = 's32[1]{0}', space=sflag, size = 0x4, scoped, tag = 'scoped memory for tpu_custom_call.1']
    #allocation7 [shape = 'u8[131072]{0}', space=vmem, size = 0x20000, scoped, tag = 'output window, operand 0']
    %7 = vsyncpa [#allocation3], 0
    %s8 = scalar_lea.sflag [#allocation3], 1
    %9 = vsyncpa %s8, 0
    %10 = vsyncpa [#allocation6], 0
    %11 = vsyncpa [#allocation4], 0
    %s12 = scalar_lea.sflag [#allocation4], 1
    %13 = vsyncpa %s12, 0
    loop: start=0, step=1, limit=4
    $region2: #{tpu_custom_call.1} parent=1 // loop_pre_header
      _
    $region3: #{tpu_custom_call.1} parent=1 // loop_header
      %s15 = sphi 0, %s19
      %p16 = scmp.ge.s32.totalorder %s15, 4
      %s25 = sphi 0, %s27
      %s28 = sphi 0, %s25
      %s29 = sphi 0, %s28
      %s45 = sphi 0, %s29
      %s49 = sphi 0, %s49
      %s51 = sphi 0, %s49
      %s52 = sphi 0, %s51
      %s66 = sphi 0, %s52
      %s72 = sphi 0, %s74
      %s75 = sphi 0, %s72
      %s76 = sphi 0, %s75
      %s92 = sphi 0, %s76
    $region4: #{tpu_custom_call.1} parent=1 // loop_header_branch
      %18 = sbr.rel (%p16) target = $region8
    $region5: #{tpu_custom_call.1} parent=1 // loop_body
      %s20 = ssub.s32 %s15, 1
      %s21 = ssub.s32 %s15, 2
      %s22 = sadd.s32 %s15, 1
      %s23 = ssub.s32 %s15, %s22
      %p24 = scmp.eq.s32.totalorder %s23, 0
      %s26 = sadd.s32 %s25, 1
      %s27 = scalar_select %p24, %s25, %s26
      %p30 = pneg %p24
      %p31 = scmp.eq.s32.totalorder %s15, 1
      %p32 = por %p30, %p31
      %p33 = scmp.ne.s32.totalorder %s25, %s28
      %p34 = scmp.eq.s32.totalorder %s15, 0
      %p35 = por %p33, %p34
      %p36 = scmp.ne.s32.totalorder %s25, %s28
      %p37 = scmp.eq.s32.totalorder %s20, 1
      %p38 = por %p36, %p37
      %p39 = scmp.ne.s32.totalorder %s28, %s29
      %p40 = scmp.eq.s32.totalorder %s20, 0
      %p41 = por %p39, %p40
      %p42 = scmp.ne.s32.totalorder %s28, %s29
      %p43 = scmp.eq.s32.totalorder %s21, 1
      %p44 = por %p42, %p43
      %p46 = scmp.ne.s32.totalorder %s29, %s45
      %p47 = scmp.eq.s32.totalorder %s21, 0
      %p48 = por %p46, %p47
      %s50 = sadd.s32 %s49, 1
      %p53 = scmp.eq.s32.totalorder %s15, 1
      %p54 = scmp.ne.s32.totalorder %s49, %s51
      %p55 = scmp.eq.s32.totalorder %s15, 0
      %p56 = por %p54, %p55
      %p57 = scmp.ne.s32.totalorder %s49, %s51
      %p58 = scmp.eq.s32.totalorder %s20, 1
      %p59 = por %p57, %p58
      %p60 = scmp.ne.s32.totalorder %s51, %s52
      %p61 = scmp.eq.s32.totalorder %s20, 0
      %p62 = por %p60, %p61
      %p63 = scmp.ne.s32.totalorder %s51, %s52
      %p64 = scmp.eq.s32.totalorder %s21, 1
      %p65 = por %p63, %p64
      %p67 = scmp.ne.s32.totalorder %s52, %s66
      %p68 = scmp.eq.s32.totalorder %s21, 0
      %p69 = por %p67, %p68
      %s70 = ssub.s32 %s15, %s22
      %p71 = scmp.eq.s32.totalorder %s70, 0
      %s73 = sadd.s32 %s72, 1
      %s74 = scalar_select %p71, %s72, %s73
      %p77 = pneg %p71
      %p78 = scmp.eq.s32.totalorder %s15, 1
      %p79 = por %p77, %p78
      %p80 = scmp.ne.s32.totalorder %s72, %s75
      %p81 = scmp.eq.s32.totalorder %s15, 0
      %p82 = por %p80, %p81
      %p83 = scmp.ne.s32.totalorder %s72, %s75
      %p84 = scmp.eq.s32.totalorder %s20, 1
      %p85 = por %p83, %p84
      %p86 = scmp.ne.s32.totalorder %s75, %s76
      %p87 = scmp.eq.s32.totalorder %s20, 0
      %p88 = por %p86, %p87
      %p89 = scmp.ne.s32.totalorder %s75, %s76
      %p90 = scmp.eq.s32.totalorder %s21, 1
      %p91 = por %p89, %p90
      %p93 = scmp.ne.s32.totalorder %s76, %s92
      %p94 = scmp.eq.s32.totalorder %s21, 0
      %p95 = por %p93, %p94
      %p96 = scmp.le.s32.totalorder 1, %s15
      %p97 = scmp.lt.s32.totalorder %s15, 3
      %p98 = pnand %p96, %p97
      %p99 = pneg %p98
      // Predicated region
      $region9: #{tpu_custom_call.1} parent=5 // pred_check
        _
      $region10: #{tpu_custom_call.1} parent=5 // pred_check_branch
        %101 = sbr.rel (%p98) target = $region12
      $region11: #{tpu_custom_call.1} parent=5 // pred_region
        %s102 = ssub.s32 %s15, 1
        // Predicated region
        $region13: #{tpu_custom_call.1} parent=11 // pred_check
          %p103 = pneg %p62
        $region14: #{tpu_custom_call.1} parent=11 // pred_check_branch
          %105 = sbr.rel (%p103) target = $region16
        $region15: #{tpu_custom_call.1} parent=11 // pred_region
          %s107 = ssub.s32 64, 64
          %108 = vsyncadd [#allocation6], %s107
          %s110 = sshll.u32 [#allocation5], 4
          %s111 = int_to_ptr.vmem [resolvable:$true] %s110
          %113 = dma.hbm_to_vmem [thread:$0]  %s1, 64, %s111, [#allocation6]
        $region16: #{tpu_custom_call.1} parent=11 // pred_fallthru
          _
      $region12: #{tpu_custom_call.1} parent=5 // pred_fallthru
        _
      %p114 = scmp.lt.s32.totalorder %s15, 2
      // Predicated region
      $region17: #{tpu_custom_call.1} parent=5 // pred_check
        %p115 = pneg %p114
      $region18: #{tpu_custom_call.1} parent=5 // pred_check_branch
        %117 = sbr.rel (%p115) target = $region20
      $region19: #{tpu_custom_call.1} parent=5 // pred_region
        // Predicated region
        $region21: #{tpu_custom_call.1} parent=19 // pred_check
          %p118 = pneg %p35
        $region22: #{tpu_custom_call.1} parent=19 // pred_check_branch
          %120 = sbr.rel (%p118) target = $region24
        $region23: #{tpu_custom_call.1} parent=19 // pred_region
          %s121 = sand.u32 %s25, 1
          %s122 = scalar_lea.sflag [#allocation3], %s121
          %s123 = sand.u32 %s25, 1
          %s124 = smul.addr %s123, 128
          %s125 = scalar_lea.vmem [#allocation2], %s124
          %s126 = smul.u32 4, %s15
          %s128 = ssub.s32 2048, 2048
          %129 = vsyncadd %s122, %s128
          %s130 = smul.addr %s126, 4
          %s131 = smul.addr %s130, 128
          %s132 = scalar_lea.hbm %s0, %s131
          %s133 = sshll.u32 %s125, 4
          %s134 = int_to_ptr.vmem [resolvable:$true] %s133
          %139 = dma.hbm_to_vmem [thread:$0]  %s132, 2048, %s134, %s122, 512, 512, 32
        $region24: #{tpu_custom_call.1} parent=19 // pred_fallthru
          _
      $region20: #{tpu_custom_call.1} parent=5 // pred_fallthru
        _
      %p140 = scmp.le.s32.totalorder 1, %s15
      %p141 = scmp.lt.s32.totalorder %s15, 3
      %p142 = pnand %p140, %p141
      %p143 = pneg %p142
      // Predicated region
      $region25: #{tpu_custom_call.1} parent=5 // pred_check
        _
      $region26: #{tpu_custom_call.1} parent=5 // pred_check_branch
        %145 = sbr.rel (%p142) target = $region28
      $region27: #{tpu_custom_call.1} parent=5 // pred_region
        %s146 = ssub.s32 %s15, 1
        %s147 = sand.u32 %s28, 1
        %s148 = scalar_lea.sflag [#allocation3], %s147
        %s149 = sand.u32 %s28, 1
        %s150 = smul.addr %s149, 128
        %s151 = scalar_lea.vmem [#allocation2], %s150
        // Predicated region
        $region29: #{tpu_custom_call.1} parent=27 // pred_check
          %p152 = pneg %p41
        $region30: #{tpu_custom_call.1} parent=27 // pred_check_branch
          %154 = sbr.rel (%p152) target = $region32
        $region31: #{tpu_custom_call.1} parent=27 // pred_region
          %155 = dma.done %s148, 2048
        $region32: #{tpu_custom_call.1} parent=27 // pred_fallthru
          _
        // Predicated region
        $region33: #{tpu_custom_call.1} parent=27 // pred_check
          %p156 = pneg %p62
        $region34: #{tpu_custom_call.1} parent=27 // pred_check_branch
          %158 = sbr.rel (%p156) target = $region36
        $region35: #{tpu_custom_call.1} parent=27 // pred_region
          %159 = dma.done [#allocation6], 64
        $region36: #{tpu_custom_call.1} parent=27 // pred_fallthru
          _
        %s160 = sand.u32 %s28, 1
        %s161 = scalar_lea.sflag [#allocation3], %s160
        %s162 = sand.u32 %s28, 1
        %s163 = smul.addr %s162, 128
        %s164 = scalar_lea.vmem [#allocation2], %s163
        %p165 = pneg %p41
        %p166 = pneg %p38
        %p167 = pneg %p62
        %p168 = pneg %p59
        %p169 = pneg %p88
        %p170 = pneg %p85
        %s171 = sand.u32 %s75, 1
        %s172 = scalar_lea.sflag [#allocation4], %s171
        %s173 = sand.u32 %s75, 1
        %s174 = smul.addr %s173, 128
        %s175 = scalar_lea.vmem [#allocation7], %s174
        %s176 = smul.u32 4, %s20
        %s177 = smul.u32 4, %s20
        %v178 = vld [vmem:[%s151] sm:$0xff]
        %v179 = vld [vmem:[%s151 + $0x8] sm:$0xff]
        %v180 = vld [vmem:[%s151 + $0x10] sm:$0xff]
        %v181 = vld [vmem:[%s151 + $0x18] sm:$0xff]
        %v182 = vld [vmem:[%s151 + $0x20] sm:$0xff]
        %v183 = vld [vmem:[%s151 + $0x28] sm:$0xff]
        %v184 = vld [vmem:[%s151 + $0x30] sm:$0xff]
        %v185 = vld [vmem:[%s151 + $0x38] sm:$0xff]
        %v186 = vld [vmem:[%s151 + $0x40] sm:$0xff]
        %v187 = vld [vmem:[%s151 + $0x48] sm:$0xff]
        %v188 = vld [vmem:[%s151 + $0x50] sm:$0xff]
        %v189 = vld [vmem:[%s151 + $0x58] sm:$0xff]
        %v190 = vld [vmem:[%s151 + $0x60] sm:$0xff]
        %v191 = vld [vmem:[%s151 + $0x68] sm:$0xff]
        %v192 = vld [vmem:[%s151 + $0x70] sm:$0xff]
        %v193 = vld [vmem:[%s151 + $0x78] sm:$0xff]
        %v194 = vld [vmem:[#allocation5] sm:$0xf]
        %v196 = vlaneseq
        %v197 = vshrl.u32 %v196, 7
        %v198 = vsub.s32 0, %v197
        %v199 = vrot.slane %v194, %v198
        %v200 = vlaneseq
        %v201 = vshrl.u32 %v200, 7
        %v202 = vsub.s32 1, %v201
        %v203 = vrot.slane %v194, %v202
        %v204 = vlaneseq
        %v205 = vshrl.u32 %v204, 7
        %v206 = vsub.s32 2, %v205
        %v207 = vrot.slane %v194, %v206
        %v208 = vlaneseq
        %v209 = vshrl.u32 %v208, 7
        %v210 = vsub.s32 3, %v209
        %v211 = vrot.slane %v194, %v210
        %v216 = vadd.f32 %v178, %v199
        %v217 = vadd.f32 %v179, %v203
        %v218 = vadd.f32 %v180, %v207
        %v219 = vadd.f32 %v181, %v211
        %v220 = vadd.f32 %v182, %v199
        %v221 = vadd.f32 %v183, %v203
        %v222 = vadd.f32 %v184, %v207
        %v223 = vadd.f32 %v185, %v211
        %v224 = vadd.f32 %v186, %v199
        %v225 = vadd.f32 %v187, %v203
        %v226 = vadd.f32 %v188, %v207
        %v227 = vadd.f32 %v189, %v211
        %v228 = vadd.f32 %v190, %v199
        %v229 = vadd.f32 %v191, %v203
        %v230 = vadd.f32 %v192, %v207
        %v231 = vadd.f32 %v193, %v211
        %232 = vst [vmem:[%s175] sm:$0xff] %v216
        %233 = vst [vmem:[%s175 + $0x8] sm:$0xff] %v217
        %234 = vst [vmem:[%s175 + $0x10] sm:$0xff] %v218
        %vm235 = vcmask 130048
        %236 = vst.msk [vmem:[%s175 + $0x18] sm:$0xff] %vm235, %v219
        %237 = vst [vmem:[%s175 + $0x20] sm:$0xff] %v220
        %238 = vst [vmem:[%s175 + $0x28] sm:$0xff] %v221
        %239 = vst [vmem:[%s175 + $0x30] sm:$0xff] %v222
        %240 = vst.msk [vmem:[%s175 + $0x38] sm:$0xff] %vm235, %v223
        %241 = vst [vmem:[%s175 + $0x40] sm:$0xff] %v224
        %242 = vst [vmem:[%s175 + $0x48] sm:$0xff] %v225
        %243 = vst [vmem:[%s175 + $0x50] sm:$0xff] %v226
        %244 = vst.msk [vmem:[%s175 + $0x58] sm:$0xff] %vm235, %v227
        %245 = vst [vmem:[%s175 + $0x60] sm:$0xff] %v228
        %246 = vst [vmem:[%s175 + $0x68] sm:$0xff] %v229
        %247 = vst [vmem:[%s175 + $0x70] sm:$0xff] %v230
        %248 = vst.msk [vmem:[%s175 + $0x78] sm:$0xff] %vm235, %v231
        %s249 = sand.u32 %s75, 1
        %s250 = scalar_lea.sflag [#allocation4], %s249
        %s251 = sand.u32 %s75, 1
        %s252 = smul.addr %s251, 128
        %s253 = scalar_lea.vmem [#allocation7], %s252
        // Predicated region
        $region37: #{tpu_custom_call.1} parent=27 // pred_check
          %p254 = pneg %p85
        $region38: #{tpu_custom_call.1} parent=27 // pred_check_branch
          %256 = sbr.rel (%p254) target = $region40
        $region39: #{tpu_custom_call.1} parent=27 // pred_region
          %s257 = smul.u32 4, %s20
          %s259 = ssub.s32 2048, 2048
          %260 = vsyncadd %s250, %s259
          %s261 = smul.addr %s257, 4
          %s262 = smul.addr %s261, 128
          %s263 = scalar_lea.hbm %s2, %s262
          %s264 = sshll.u32 %s253, 4
          %s265 = int_to_ptr.vmem [resolvable:$true] %s264
          %270 = dma.vmem_to_hbm [thread:$0]  %s265, 2048, %s263, %s250, 512, 512, 32
        $region40: #{tpu_custom_call.1} parent=27 // pred_fallthru
          _
      $region28: #{tpu_custom_call.1} parent=5 // pred_fallthru
        _
      %p271 = scmp.le.s32.totalorder 2, %s15
      // Predicated region
      $region41: #{tpu_custom_call.1} parent=5 // pred_check
        %p272 = pneg %p271
      $region42: #{tpu_custom_call.1} parent=5 // pred_check_branch
        %274 = sbr.rel (%p272) target = $region44
      $region43: #{tpu_custom_call.1} parent=5 // pred_region
        %s275 = ssub.s32 %s15, 2
        // Predicated region
        $region45: #{tpu_custom_call.1} parent=43 // pred_check
          %p276 = pneg %p91
        $region46: #{tpu_custom_call.1} parent=43 // pred_check_branch
          %278 = sbr.rel (%p276) target = $region48
        $region47: #{tpu_custom_call.1} parent=43 // pred_region
          %s279 = sand.u32 %s76, 1
          %s280 = scalar_lea.sflag [#allocation4], %s279
          %s281 = sand.u32 %s76, 1
          %s282 = smul.addr %s281, 128
          %s283 = scalar_lea.vmem [#allocation7], %s282
          %284 = dma.done %s280, 2048
        $region48: #{tpu_custom_call.1} parent=43 // pred_fallthru
          _
      $region44: #{tpu_custom_call.1} parent=5 // pred_fallthru
        _
    $region6: #{tpu_custom_call.1} parent=1 // loop_footer
      %s19 = sadd.s32 1, %s15
    $region7: #{tpu_custom_call.1} parent=1 // loop_footer_branch
      %14 = sbr.rel target = $region3
    $region8: #{tpu_custom_call.1} parent=1 // loop_exit
      _
    %285 = vsyncpa [#allocation3], 1
    %s286 = scalar_lea.sflag [#allocation3], 1
    %287 = vsyncpa %s286, 1
    %288 = vsyncpa [#allocation6], 1
    %289 = vsyncpa [#allocation4], 1
    %s290 = scalar_lea.sflag [#allocation4], 1
    %291 = vsyncpa %s290, 1

</llo_original>
